<compile_context>
chip_gen: v6e
topology: v6e:2x2x1
jax: 0.10.0
libtpu: 0.0.40
codegen_flags: <defaults>
</compile_context>

<pallas_src>
import functools
import math

import jax
import jax.numpy as jnp
from jax import lax
from jax.experimental import pallas as pl
from jax.experimental.pallas import tpu as pltpu


def _nonlinear_kernel(*refs, activation, k_tiled):
    if activation == "prelu":
        if k_tiled:
            x_ref, w_ref, b_ref, a_ref, o_ref, acc_ref = refs
        else:
            x_ref, w_ref, b_ref, a_ref, o_ref = refs
            acc_ref = None
    else:
        a_ref = None
        if k_tiled:
            x_ref, w_ref, b_ref, o_ref, acc_ref = refs
        else:
            x_ref, w_ref, b_ref, o_ref = refs
            acc_ref = None

    # x: (tm, tk); w: (tn, tk) in native nn.Linear layout. Contract the last
    # dims (x @ W.T) directly on the MXU with f32 accumulation -- no transpose.
    part = lax.dot_general(
        x_ref[...], w_ref[...],
        dimension_numbers=(((1,), (1,)), ((), ())),
        preferred_element_type=jnp.float32)

    def finalize(acc):
        y = acc + b_ref[...]
        if activation == "relu":
            y = jnp.maximum(y, 0.0)
        elif activation == "tanh":
            y = jnp.tanh(y)
        elif activation == "leakyrelu":
            y = jnp.where(y >= 0.0, y, 0.1 * y)     # module uses slope 0.1
        elif activation == "prelu":
            y = jnp.where(y >= 0.0, y, a_ref[...] * y)
        elif activation is not None:
            raise ValueError(f"unsupported activation: {activation}")
        o_ref[...] = y.astype(o_ref.dtype)

    if k_tiled:
        k = pl.program_id(2)

        @pl.when(k == 0)
        def _():
            acc_ref[...] = part

        @pl.when(k > 0)
        def _():
            acc_ref[...] += part

        @pl.when(k == pl.num_programs(2) - 1)
        def _():
            finalize(acc_ref[...])
    else:
        finalize(part)


def _pick_tile(dim, block, unit=128):
    """Largest multiple of `unit` that divides `dim` and is <= block; falls
    back to full extent when `dim` is not a multiple of `unit`."""
    if dim % unit != 0:
        return dim
    cap = min(dim, max(unit, (block // unit) * unit))
    for cand in range(cap, unit - 1, -unit):
        if dim % cand == 0:
            return cand
    return dim


def _est_vmem_bytes(tm, tn, tk, in_bytes, out_bytes, k_tiled, prelu):
    x_blk = tm * tk * in_bytes
    w_blk = tn * tk * in_bytes
    b_blk = 8 * tn * 4 * (2 if prelu else 1)      # bias (+alpha), 8-sublane pad
    o_blk = tm * tn * out_bytes
    acc = tm * tn * 4 if k_tiled else 0
    return 2 * (x_blk + w_blk + b_blk + o_blk) + acc   # double-buffered


def nonlinear_forward(x, weight, bias, *, activation="relu", prelu_weight=None,
                      compute_dtype=None, block_m=256, block_n=256,
                      block_k=1024, vmem_limit_bytes=32 * 1024 * 1024):
    """NonLinear.forward: y = act(x @ weight.T + bias).

    x:             (..., input_size)
    weight:        (hidden_size, input_size)  -- native PyTorch nn.Linear layout
    bias:          (hidden_size,)
    activation:    None | 'relu' | 'tanh' | 'leakyrelu' | 'prelu'
    prelu_weight:  scalar or (hidden_size,) array (only for 'prelu')
    compute_dtype: optional MXU operand dtype (e.g. jnp.bfloat16); cast happens
                   once in the wrapper, accumulation stays f32.
    """
    if activation not in (None, "relu", "tanh", "leakyrelu", "prelu"):
        raise ValueError(f"unsupported activation: {activation}")

    orig_dtype = x.dtype
    in_size = x.shape[-1]
    hid = weight.shape[0]
    lead = x.shape[:-1]
    m = max(1, math.prod(lead))

    # Fold every leading dim into the matmul M dimension (no pad, no slice).
    x2 = x.reshape(m, in_size)

    in_bytes = jnp.dtype(compute_dtype if compute_dtype is not None
                         else x.dtype).itemsize
    out_bytes = jnp.dtype(orig_dtype).itemsize
    budget = 24 * 1024 * 1024          # safe double-buffered cap on v5e/v6e/v7x
    is_prelu = activation == "prelu"

    block_m = max(8, (block_m // 8) * 8)
    tm = block_m if m >= block_m else m
    tk = _pick_tile(in_size, block_k)

    def fits(tm_, tn_, tk_):
        return _est_vmem_bytes(tm_, tn_, tk_, in_bytes, out_bytes,
                               tk_ < in_size, is_prelu) <= budget

    # Prefer holding the whole hidden dim per block (weight + bias DMA'd exactly
    # once per call); fall back to a lane-dense 128-multiple divisor of hid.
    tn = hid if fits(tm, hid, tk) else _pick_tile(hid, block_n)

    # Shrink K, then N, then M blocks until the double-buffered footprint fits.
    while not fits(tm, tn, tk):
        if tk > 128 and in_size % 128 == 0:
            tk = _pick_tile(in_size, max(128, tk // 2))
        elif tn > 128 and hid % 128 == 0:
            tn = _pick_tile(hid, max(128, tn // 2))
        elif tm > 8:
            tm = max(8, ((tm // 2) + 7) // 8 * 8)
        else:
            break

    # v7x megacore: avoid a (1, 1) parallel grid for non-trivial small-M shapes.
    if (pl.cdiv(m, tm) == 1 and tn == hid and hid % 256 == 0
            and m * hid >= 16384):
        tn = hid // 2

    grid_n = hid // tn
    grid_m = pl.cdiv(m, tm)
    grid_k = in_size // tk
    k_tiled = grid_k > 1

    # Operand casts happen once here (not per tile inside the kernel).
    x_in = x2 if compute_dtype is None else x2.astype(compute_dtype)
    w_in = weight if compute_dtype is None else weight.astype(compute_dtype)
    b_in = bias.reshape(1, hid).astype(jnp.float32)

    # Grid order (j, i, k): weight block index (j, k) is constant across the
    # inner M sweep -> Pallas skips the re-copy; K is the innermost reduction.
    in_specs = [
        pl.BlockSpec((tm, tk), lambda j, i, k: (i, k)),   # activations
        pl.BlockSpec((tn, tk), lambda j, i, k: (j, k)),   # weight (native layout)
        pl.BlockSpec((1, tn), lambda j, i, k: (0, j)),    # bias (f32)
    ]
    inputs = [x_in, w_in, b_in]

    if is_prelu:
        if prelu_weight is None:
            raise ValueError("prelu activation requires prelu_weight")
        alpha = jnp.broadcast_to(
            jnp.asarray(prelu_weight, jnp.float32).reshape(-1), (hid,)
        ).reshape(1, hid)
        in_specs.append(pl.BlockSpec((1, tn), lambda j, i, k: (0, j)))
        inputs.append(alpha)

    scratch_shapes = [pltpu.VMEM((tm, tn), jnp.float32)] if k_tiled else []

    kernel = functools.partial(
        _nonlinear_kernel, activation=activation, k_tiled=k_tiled)

    y = pl.pallas_call(
        kernel,
        out_shape=jax.ShapeDtypeStruct((m, hid), orig_dtype),
        grid_spec=pltpu.PrefetchScalarGridSpec(
            num_scalar_prefetch=0,
            grid=(grid_n, grid_m, grid_k),
            in_specs=in_specs,
            out_specs=pl.BlockSpec((tm, tn), lambda j, i, k: (i, j)),
            scratch_shapes=scratch_shapes),
        compiler_params=pltpu.CompilerParams(
            dimension_semantics=("parallel", "parallel", "arbitrary"),
            vmem_limit_bytes=vmem_limit_bytes),
    )(*inputs)

    return y.reshape(*lead, hid)


def _reference_forward(x, weight, bias, activation, prelu_weight=None):
    """Pure-JAX reference mirroring the PyTorch NonLinear forward."""
    y = x @ weight.T + bias
    if activation == "relu":
        return jnp.maximum(y, 0.0)
    if activation == "tanh":
        return jnp.tanh(y)
    if activation == "leakyrelu":
        return jnp.where(y >= 0.0, y, 0.1 * y)
    if activation == "prelu":
        a = jnp.broadcast_to(
            jnp.asarray(prelu_weight, jnp.float32).reshape(-1),
            (weight.shape[0],))
        return jnp.where(y >= 0.0, y, a * y)
    return y


if __name__ == "__main__":
    key = jax.random.PRNGKey(0)
    keys = jax.random.split(key, 12)

    # 1) Small module-consistent shapes: batch=2, seq=8, input=32, hidden=128.
    B, L, IN, HID = 2, 8, 32, 128
    x = jax.random.normal(keys[0], (B, L, IN), jnp.float32)
    w = 0.1 * jax.random.normal(keys[1], (HID, IN), jnp.float32)
    b = 0.1 * jax.random.normal(keys[2], (HID,), jnp.float32)
    for act in (None, "relu", "tanh", "leakyrelu", "prelu"):
        pw = jnp.full((1,), 0.25, jnp.float32) if act == "prelu" else None
        y = nonlinear_forward(x, w, b, activation=act, prelu_weight=pw)
        jax.block_until_ready(y)
        ref = _reference_forward(x, w, b, act, pw)
        assert y.shape == (B, L, HID)
        assert jnp.allclose(y, ref, atol=1e-5), f"mismatch for activation={act}"

    # 2) Larger tiled case: M=512 rows folded from (4,128); weight block held
    #    resident across the inner M sweep.
    B2, L2, IN2, HID2 = 4, 128, 64, 256
    xb = jax.random.normal(keys[3], (B2, L2, IN2), jnp.float32)
    wb = 0.05 * jax.random.normal(keys[4], (HID2, IN2), jnp.float32)
    bb = 0.05 * jax.random.normal(keys[5], (HID2,), jnp.float32)
    yb = nonlinear_forward(xb, wb, bb, activation="relu")
    jax.block_until_ready(yb)
    refb = _reference_forward(xb, wb, bb, "relu")
    assert yb.shape == (B2, L2, HID2)
    assert jnp.allclose(yb, refb, atol=1e-4), "tiled relu mismatch"

    # bf16 MXU operands cast once in the wrapper, f32 accumulation.
    ybf = nonlinear_forward(xb, wb, bb, activation="relu",
                            compute_dtype=jnp.bfloat16)
    jax.block_until_ready(ybf)
    assert jnp.allclose(ybf, refb, atol=5e-2, rtol=5e-2), "bf16 relu mismatch"

    # 3) Ragged M (300 rows, 128-row tiles) handled by pl.cdiv masking.
    B3, L3, IN3, HID3 = 3, 100, 96, 384
    xr = jax.random.normal(keys[6], (B3, L3, IN3), jnp.float32)
    wr = 0.05 * jax.random.normal(keys[7], (HID3, IN3), jnp.float32)
    br = 0.05 * jax.random.normal(keys[8], (HID3,), jnp.float32)
    yr = nonlinear_forward(xr, wr, br, activation="tanh", block_m=128)
    jax.block_until_ready(yr)
    refr = _reference_forward(xr, wr, br, "tanh")
    assert yr.shape == (B3, L3, HID3)
    assert jnp.allclose(yr, refr, atol=1e-4), "ragged tanh mismatch"

    # 4) K-tiled accumulator path (input_size=512 split into 2 x 256 K blocks)
    #    plus the megacore split of the hidden dim.
    B4, L4, IN4, HID4 = 2, 64, 512, 256
    xk = jax.random.normal(keys[9], (B4, L4, IN4), jnp.float32)
    wk = 0.02 * jax.random.normal(keys[10], (HID4, IN4), jnp.float32)
    bk = 0.02 * jax.random.normal(keys[11], (HID4,), jnp.float32)
    yk = nonlinear_forward(xk, wk, bk, activation="leakyrelu", block_k=256)
    jax.block_until_ready(yk)
    refk = _reference_forward(xk, wk, bk, "leakyrelu")
    assert yk.shape == (B4, L4, HID4)
    assert jnp.allclose(yk, refk, atol=1e-3, rtol=1e-3), "k-tiled leakyrelu mismatch"

    print("KERNEL_OK")
</pallas_src>

<mosaic_0001>
module attributes {stable_mosaic.version = 11 : i64} {
  func.func @_nonlinear_kernel(%arg0: i32, %arg1: i32, %arg2: i32, %arg3: memref<16x32xf32, #tpu.memory_space<vmem>>, %arg4: memref<128x32xf32, #tpu.memory_space<vmem>>, %arg5: memref<1x128xf32, #tpu.memory_space<vmem>>, %arg6: memref<16x128xf32, #tpu.memory_space<vmem>>) attributes {dimension_semantics = [#tpu.dimension_semantics<parallel>, #tpu.dimension_semantics<parallel>, #tpu.dimension_semantics<arbitrary>], iteration_bounds = array<i64: 1, 1, 1>, scalar_prefetch = 0 : i64, scratch_operands = 0 : i64, tpu.core_type = #tpu.core_type<tc>, window_params = [{transform_indices = @transform_0, window_bounds = array<i64: 16, 32>}, {transform_indices = @transform_1, window_bounds = array<i64: 128, 32>}, {transform_indices = @transform_2, window_bounds = array<i64: 1, 128>}, {transform_indices = @transform_3, window_bounds = array<i64: 16, 128>}]} {
    %c0 = arith.constant 0 : index
    %c0_0 = arith.constant 0 : index
    %0 = vector.load %arg3[%c0, %c0_0] : memref<16x32xf32, #tpu.memory_space<vmem>>, vector<16x32xf32>
    %c0_1 = arith.constant 0 : index
    %c0_2 = arith.constant 0 : index
    %1 = vector.load %arg4[%c0_1, %c0_2] : memref<128x32xf32, #tpu.memory_space<vmem>>, vector<128x32xf32>
    %cst = arith.constant dense<0.000000e+00> : vector<16x128xf32>
    %2 = tpu.matmul %0, %1, %cst {dimension_numbers = #tpu.dot_dimension_numbers<[1], [1], [0], [0], [0, 0, 1, 0], [], []>} : vector<16x32xf32>, vector<128x32xf32>, vector<16x128xf32> -> vector<16x128xf32>
    %c0_3 = arith.constant 0 : index
    %c0_4 = arith.constant 0 : index
    %3 = vector.load %arg5[%c0_3, %c0_4] : memref<1x128xf32, #tpu.memory_space<vmem>>, vector<1x128xf32>
    %4 = vector.broadcast %3 : vector<1x128xf32> to vector<16x128xf32>
    %5 = arith.addf %2, %4 : vector<16x128xf32>
    %c0_5 = arith.constant 0 : index
    %c0_6 = arith.constant 0 : index
    %6 = vector.load %arg6[%c0_5, %c0_6] : memref<16x128xf32, #tpu.memory_space<vmem>>, vector<16x128xf32>
    tpu.vector_store %arg6[%c0_5, %c0_6], %5 {strides = array<i32>} : memref<16x128xf32, #tpu.memory_space<vmem>>, vector<16x128xf32>,
    return
  }
  func.func @transform_0(%arg0: i32, %arg1: i32, %arg2: i32) -> (i32, i32) {
    %c0_i32 = arith.constant 0 : i32
    return %arg1, %arg2 : i32, i32
  }
  func.func @transform_1(%arg0: i32, %arg1: i32, %arg2: i32) -> (i32, i32) {
    %c0_i32 = arith.constant 0 : i32
    return %arg0, %arg2 : i32, i32
  }
  func.func @transform_2(%arg0: i32, %arg1: i32, %arg2: i32) -> (i32, i32) {
    %c0_i32 = arith.constant 0 : i32
    %c0_i32_0 = arith.constant 0 : i32
    return %c0_i32, %arg0 : i32, i32
  }
  func.func @transform_3(%arg0: i32, %arg1: i32, %arg2: i32) -> (i32, i32) {
    %c0_i32 = arith.constant 0 : i32
    return %arg1, %arg0 : i32, i32
  }
}

</mosaic_0001>

<llo_original>
// kernel: tpu_custom_call.1
$region0: #{tpu_custom_call.1}
  #allocation0 [shape = 'u32[]', space=smem, size = 0x4, offset = 0x4, fixed_abs, tag = 'smem constant byte address 0x4 - core index']
  #allocation1 [shape = 'u32[144,128]{1,0:T(1,128)}', space=vmem, size = 0x12000, scoped, tag = 'internal scratch']
  %s0 = inlined_call_operand.vmem [shape: f32[16,32], index: 0, kind: input, shape index: {}]
  %s1 = inlined_call_operand.vmem [shape: f32[128,32], index: 1, kind: input, shape index: {}]
  %s2 = inlined_call_operand.vmem [shape: f32[1,128], index: 2, kind: input, shape index: {}]
  %s3 = inlined_call_operand.hbm [shape: f32[16,128], index: 3, kind: output, shape index: {}]
  %s4 = sld [smem:[#allocation0]]
  $region22: #{tpu_custom_call.1} parent=0
    _
  %s6 = ssub.s32 1, %s4
  %s7 = scalar_select 0, %s6, %s4
  $region1: #{tpu_custom_call.1} parent=0
    #allocation2 [shape = 'u8[8192]{0}', space=vmem, size = 0x2000, scoped, tag = 'output window, operand 0, single buffered']
    #allocation3 [shape = 's32[1]{0}', space=sflag, size = 0x4, scoped, tag = 'scoped memory for tpu_custom_call.1']
    %8 = vsyncpa [#allocation3], 0
    // Predicated region
    $region2: #{tpu_custom_call.1} parent=1 // pred_check
      _
    $region3: #{tpu_custom_call.1} parent=1 // pred_check_branch
      %10 = sbr.rel (0) target = $region5
    $region4: #{tpu_custom_call.1} parent=1 // pred_region
      _
    $region5: #{tpu_custom_call.1} parent=1 // pred_fallthru
      _
    // Predicated region
    $region6: #{tpu_custom_call.1} parent=1 // pred_check
      _
    $region7: #{tpu_custom_call.1} parent=1 // pred_check_branch
      %12 = sbr.rel (0) target = $region9
    $region8: #{tpu_custom_call.1} parent=1 // pred_region
      _
    $region9: #{tpu_custom_call.1} parent=1 // pred_fallthru
      _
    // Predicated region
    $region10: #{tpu_custom_call.1} parent=1 // pred_check
      _
    $region11: #{tpu_custom_call.1} parent=1 // pred_check_branch
      %14 = sbr.rel (0) target = $region13
    $region12: #{tpu_custom_call.1} parent=1 // pred_region
      _
    $region13: #{tpu_custom_call.1} parent=1 // pred_fallthru
      _
    %v15 = vld [vmem:[%s0] sm:$0xff]
    %v16 = vld [vmem:[%s0 + $0x8] sm:$0xff]
    %v17 = vld [vmem:[%s1] sm:$0xff]
    %v18 = vld [vmem:[%s1 + $0x8] sm:$0xff]
    %v19 = vld [vmem:[%s1 + $0x10] sm:$0xff]
    %v20 = vld [vmem:[%s1 + $0x18] sm:$0xff]
    %v21 = vld [vmem:[%s1 + $0x20] sm:$0xff]
    %v22 = vld [vmem:[%s1 + $0x28] sm:$0xff]
    %v23 = vld [vmem:[%s1 + $0x30] sm:$0xff]
    %v24 = vld [vmem:[%s1 + $0x38] sm:$0xff]
    %v25 = vld [vmem:[%s1 + $0x40] sm:$0xff]
    %v26 = vld [vmem:[%s1 + $0x48] sm:$0xff]
    %v27 = vld [vmem:[%s1 + $0x50] sm:$0xff]
    %v28 = vld [vmem:[%s1 + $0x58] sm:$0xff]
    %v29 = vld [vmem:[%s1 + $0x60] sm:$0xff]
    %v30 = vld [vmem:[%s1 + $0x68] sm:$0xff]
    %v31 = vld [vmem:[%s1 + $0x70] sm:$0xff]
    %v32 = vld [vmem:[%s1 + $0x78] sm:$0xff]
    %v33 = vld [vmem:[%s2] sm:$0x1]
    %v35 = vlaneseq
    %v36 = vshrl.u32 %v35, 7
    %v37 = vsub.s32 0, %v36
    %v38 = vrot.slane %v33, %v37
    %vm40 = vcmask 261120
    %v42 = vsel %vm40, %v15, 0
    %v45 = vsel %vm40, %v16, 0
    %v48 = vsel %vm40, %v17, 0
    %v51 = vsel %vm40, %v18, 0
    %v54 = vsel %vm40, %v19, 0
    %v57 = vsel %vm40, %v20, 0
    %v60 = vsel %vm40, %v21, 0
    %v63 = vsel %vm40, %v22, 0
    %v66 = vsel %vm40, %v23, 0
    %v69 = vsel %vm40, %v24, 0
    %v72 = vsel %vm40, %v25, 0
    %v75 = vsel %vm40, %v26, 0
    %v78 = vsel %vm40, %v27, 0
    %v81 = vsel %vm40, %v28, 0
    %v84 = vsel %vm40, %v29, 0
    %v87 = vsel %vm40, %v30, 0
    %v90 = vsel %vm40, %v31, 0
    %v93 = vsel %vm40, %v32, 0
    %95 = vmatprep.subr.mxu0 0.0
    %96 = vmatpush1.xpose.msra.mxu0 %v93
    %97 = vmatprep.subr.mxu0 0.0
    %98 = vmatpush1.xpose.msra.mxu0 %v90
    %99 = vmatprep.subr.mxu0 0.0
    %100 = vmatpush1.xpose.msra.mxu0 %v87
    %101 = vmatprep.subr.mxu0 0.0
    %102 = vmatpush1.xpose.msra.mxu0 %v84
    %103 = vmatprep.subr.mxu0 0.0
    %104 = vmatpush1.xpose.msra.mxu0 %v81
    %105 = vmatprep.subr.mxu0 0.0
    %106 = vmatpush1.xpose.msra.mxu0 %v78
    %107 = vmatprep.subr.mxu0 0.0
    %108 = vmatpush1.xpose.msra.mxu0 %v75
    %109 = vmatprep.subr.mxu0 0.0
    %110 = vmatpush1.xpose.msra.mxu0 %v72
    %111 = vmatprep.subr.mxu0 0.0
    %112 = vmatpush1.xpose.msra.mxu0 %v69
    %113 = vmatprep.subr.mxu0 0.0
    %114 = vmatpush1.xpose.msra.mxu0 %v66
    %115 = vmatprep.subr.mxu0 0.0
    %116 = vmatpush1.xpose.msra.mxu0 %v63
    %117 = vmatprep.subr.mxu0 0.0
    %118 = vmatpush1.xpose.msra.mxu0 %v60
    %119 = vmatprep.subr.mxu0 0.0
    %120 = vmatpush1.xpose.msra.mxu0 %v57
    %121 = vmatprep.subr.mxu0 0.0
    %122 = vmatpush1.xpose.msra.mxu0 %v54
    %123 = vmatprep.subr.mxu0 0.0
    %124 = vmatpush1.xpose.msra.mxu0 %v51
    %125 = vmatprep.subr.mxu0 0.0
    %126 = vmatpush1.xpose.msra.mxu0 %v48
    %127 = vmatprep.subr.mxu0 0.0
    %128 = vmatpush2.xpose.msra.mxu0 0.0
    %129 = vmatprep.subr.mxu0 0.0
    %130 = vmatpush2.xpose.msra.mxu0 0.0
    %131 = vmatprep.subr.mxu0 0.0
    %132 = vmatpush2.xpose.msra.mxu0 0.0
    %133 = vmatprep.subr.mxu0 0.0
    %134 = vmatpush2.xpose.msra.mxu0 0.0
    %135 = vmatprep.subr.mxu0 0.0
    %136 = vmatpush2.xpose.msra.mxu0 0.0
    %137 = vmatprep.subr.mxu0 0.0
    %138 = vmatpush2.xpose.msra.mxu0 0.0
    %139 = vmatprep.subr.mxu0 0.0
    %140 = vmatpush2.xpose.msra.mxu0 0.0
    %141 = vmatprep.subr.mxu0 0.0
    %142 = vmatpush2.xpose.msra.mxu0 0.0
    %143 = vmatprep.subr.mxu0 0.0
    %144 = vmatpush2.xpose.msra.mxu0 0.0
    %145 = vmatprep.subr.mxu0 0.0
    %146 = vmatpush2.xpose.msra.mxu0 0.0
    %147 = vmatprep.subr.mxu0 0.0
    %148 = vmatpush2.xpose.msra.mxu0 0.0
    %149 = vmatprep.subr.mxu0 0.0
    %150 = vmatpush2.xpose.msra.mxu0 0.0
    %151 = vmatprep.subr.mxu0 0.0
    %152 = vmatpush2.xpose.msra.mxu0 0.0
    %153 = vmatprep.subr.mxu0 0.0
    %154 = vmatpush2.xpose.msra.mxu0 0.0
    %155 = vmatprep.subr.mxu0 0.0
    %156 = vmatpush2.xpose.msra.mxu0 0.0
    %157 = vmatprep.subr.mxu0 0.0
    %158 = vmatpush2.xpose.msra.mxu0 0.0
    %159 = vmatprep.mubr.f32.mxu0 0.0
    %160 = vmatmul.mubr.f32.gmra.mxu0 %v42
    %v161 = vpop.f32.mrf.mxu0
    %v162 = vadd.f32 %v38, %v161
    %v163 = vpop.f32.mrf.mxu0
    %164 = vmatprep.mubr.f32.mxu0 0.0
    %165 = vmatmul.mubr.f32.gmra.mxu0 %v45
    %v166 = vpop.f32.mrf.mxu0
    %v167 = vadd.f32 %v38, %v166
    %v168 = vpop.f32.mrf.mxu0
    %169 = vdwg.mxu0
    %170 = vst [vmem:[#allocation2] sm:$0xff] %v162
    %171 = vst [vmem:[#allocation2 + $0x8] sm:$0xff] %v167
    // Predicated region
    $region14: #{tpu_custom_call.1} parent=1 // pred_check
      _
    $region15: #{tpu_custom_call.1} parent=1 // pred_check_branch
      %173 = sbr.rel (0) target = $region17
    $region16: #{tpu_custom_call.1} parent=1 // pred_region
      %s175 = ssub.s32 256, 256
      %176 = vsyncadd [#allocation3], %s175
      %s177 = sshll.u32 [#allocation2], 4
      %s178 = int_to_ptr.vmem [resolvable:$true] %s177
      %183 = dma.vmem_to_hbm [thread:$0]  %s178, 256, %s3, [#allocation3], 128, 128, 8
    $region17: #{tpu_custom_call.1} parent=1 // pred_fallthru
      _
    // Predicated region
    $region18: #{tpu_custom_call.1} parent=1 // pred_check
      _
    $region19: #{tpu_custom_call.1} parent=1 // pred_check_branch
      %185 = sbr.rel (0) target = $region21
    $region20: #{tpu_custom_call.1} parent=1 // pred_region
      %186 = dma.done [#allocation3], 256
    $region21: #{tpu_custom_call.1} parent=1 // pred_fallthru
      _
    %187 = vsyncpa [#allocation3], 1

</llo_original>
